<compile_context>
chip_gen: v5e
topology: v5e:2x2
jax: 0.10.0
libtpu: 0.0.40
codegen_flags: <defaults>
</compile_context>

<pallas_src>
import functools

import jax
import jax.numpy as jnp
from jax.experimental import pallas as pl
from jax.experimental.pallas import tpu as pltpu

LANES = 128
ACC_ROWS = 32              # accumulator height (and row-granularity of the pad)
MAX_TILE_ROWS = 8192       # (8192,128) f32 = 4 MiB/block; 2 inputs x 2 bufs = 16 MiB


def _cdiv(a, b):
    return -(-a // b)


def _masked_sq_sum_kernel(o_ref, t_ref, out_ref, acc_ref, *,
                          n_rows, tile_rows, inv_numel, has_tail):
    i = pl.program_id(0)
    last = pl.num_programs(0) - 1

    @pl.when(i == 0)
    def _init():
        acc_ref[...] = jnp.zeros_like(acc_ref)
        out_ref[0] = 0.0

    o = o_ref[...].astype(jnp.float32)
    t = t_ref[...].astype(jnp.float32)
    diff = o - t
    sq = diff * diff

    def _fold(contrib):
        # (tile_rows,128) -> (32,128): pure vreg adds, 32 independent chains.
        return contrib.reshape(tile_rows // ACC_ROWS, ACC_ROWS, LANES).sum(axis=0)

    if has_tail:
        # Only the (single) partial tail block pays for the iota row mask.
        @pl.when(i != last)
        def _steady():
            acc_ref[...] += _fold(jnp.where(t >= 0.0, sq, 0.0))

        @pl.when(i == last)
        def _tail():
            base_row = i * tile_rows
            row_ids = base_row + jax.lax.broadcasted_iota(
                jnp.int32, (tile_rows, LANES), 0)
            # Select (NOT mask-multiply): garbage rows may hold NaN/Inf.
            mask = jnp.logical_and(row_ids < n_rows, t >= 0.0)
            acc_ref[...] += _fold(jnp.where(mask, sq, 0.0))
    else:
        acc_ref[...] += _fold(jnp.where(t >= 0.0, sq, 0.0))

    @pl.when(i == last)
    def _finish():
        # Final cross-lane reduce (XLU, once) + static 1/numel -> scalar in SMEM.
        out_ref[0] = jnp.sum(acc_ref[...]) * inv_numel


def custom_loss_unet(output, target, *, max_tile_rows=MAX_TILE_ROWS):
    """Masked MSE loss matching CustomLossUNet.forward semantics."""
    assert output.shape == target.shape
    numel = output.size  # torch .mean() denominator (counts masked entries too)

    o_flat = output.reshape(-1)
    t_flat = target.reshape(-1)

    # Pad to a multiple of 128*32 elements (<= 16 KiB).  Pad target = -1 so the
    # (target >= 0) mask zeroes the padded entries.  Keeps every row-block a
    # clean multiple of (32, 128) (also the right granularity for bf16 inputs).
    granularity = LANES * ACC_ROWS
    pad = (-numel) % granularity
    if pad:
        o_flat = jnp.pad(o_flat, (0, pad))
        t_flat = jnp.pad(t_flat, (0, pad), constant_values=-1.0)

    rows = (numel + pad) // LANES          # multiple of ACC_ROWS
    o2d = o_flat.reshape(rows, LANES)
    t2d = t_flat.reshape(rows, LANES)

    tile_rows = min(max_tile_rows, rows)   # multiple of ACC_ROWS by construction
    blocks = _cdiv(rows, tile_rows)
    has_tail = (rows % tile_rows) != 0     # static: only then emit the iota mask

    kernel = functools.partial(
        _masked_sq_sum_kernel,
        n_rows=rows, tile_rows=tile_rows,
        inv_numel=1.0 / numel, has_tail=has_tail)

    itemsize = jnp.dtype(o2d.dtype).itemsize
    cost = pl.CostEstimate(
        flops=5 * numel,
        transcendentals=0,
        bytes_accessed=2 * rows * LANES * itemsize + 4)

    result = pl.pallas_call(
        kernel,
        out_shape=jax.ShapeDtypeStruct((1,), jnp.float32),
        grid_spec=pltpu.PrefetchScalarGridSpec(
            num_scalar_prefetch=0,
            grid=(blocks,),
            in_specs=[
                pl.BlockSpec((tile_rows, LANES), lambda i: (i, 0)),
                pl.BlockSpec((tile_rows, LANES), lambda i: (i, 0)),
            ],
            out_specs=pl.BlockSpec(memory_space=pltpu.MemorySpace.SMEM),
            scratch_shapes=[pltpu.VMEM((ACC_ROWS, LANES), jnp.float32)],
        ),
        compiler_params=pltpu.CompilerParams(
            dimension_semantics=("arbitrary",),
            vmem_limit_bytes=48 * 1024 * 1024,
        ),
        cost_estimate=cost,
    )(o2d, t2d)

    return result[0]


def _ref_loss(output, target):
    return jnp.mean(((output - target) ** 2) * (target >= 0).astype(jnp.float32))


if __name__ == "__main__":
    key = jax.random.PRNGKey(0)
    k1, k2, k3, k4, k5, k6 = jax.random.split(key, 6)

    loss_fn = jax.jit(custom_loss_unet, static_argnames=("max_tile_rows",))

    # Primary check: small NCHW UNet-style output/target pair.
    shape = (2, 4, 16, 16)
    output = jax.random.normal(k1, shape, dtype=jnp.float32)
    target = jax.random.normal(k2, shape, dtype=jnp.float32)
    loss = jax.block_until_ready(loss_fn(output, target))
    ref = _ref_loss(output, target)
    assert jnp.allclose(loss, ref, rtol=1e-5, atol=1e-6), (loss, ref)

    # Non-lane-aligned element count (exercises the small pad path).
    shape2 = (3, 5, 7, 11)
    out2 = jax.random.normal(k3, shape2, dtype=jnp.float32)
    tgt2 = jax.random.normal(k4, shape2, dtype=jnp.float32)
    loss2 = jax.block_until_ready(loss_fn(out2, tgt2))
    ref2 = _ref_loss(out2, tgt2)
    assert jnp.allclose(loss2, ref2, rtol=1e-5, atol=1e-6), (loss2, ref2)

    # Multi-block + partial-tail-block path (forced via a small max_tile_rows).
    shape3 = (2, 4, 32, 40)
    out3 = jax.random.normal(k5, shape3, dtype=jnp.float32)
    tgt3 = jax.random.normal(k6, shape3, dtype=jnp.float32)
    loss3 = jax.block_until_ready(loss_fn(out3, tgt3, max_tile_rows=64))
    ref3 = _ref_loss(out3, tgt3)
    assert jnp.allclose(loss3, ref3, rtol=1e-5, atol=1e-6), (loss3, ref3)

    print("KERNEL_OK")
</pallas_src>

<mosaic_0001>
module attributes {stable_mosaic.version = 11 : i64} {
  func.func @_masked_sq_sum_kernel(%arg0: i32, %arg1: memref<32x128xf32, #tpu.memory_space<vmem>>, %arg2: memref<32x128xf32, #tpu.memory_space<vmem>>, %arg3: memref<1xf32, #tpu.memory_space<smem>>, %arg4: memref<32x128xf32, #tpu.memory_space<vmem>>) attributes {dimension_semantics = [#tpu.dimension_semantics<arbitrary>], iteration_bounds = array<i64: 1>, scalar_prefetch = 0 : i64, scratch_operands = 1 : i64, tpu.core_type = #tpu.core_type<tc>, window_params = [{transform_indices = @transform_0, window_bounds = array<i64: 32, 128>}, {transform_indices = @transform_1, window_bounds = array<i64: 32, 128>}, {transform_indices = @transform_2, window_bounds = array<i64: 1>}]} {
    %c0_i32 = arith.constant 0 : i32
    %0 = arith.cmpi eq, %arg0, %c0_i32 : i32
    %1 = arith.extui %0 : i1 to i32
    %c0_i32_0 = arith.constant 0 : i32
    %2 = arith.cmpi ne, %1, %c0_i32_0 : i32
    scf.if %2 {
      %cst_12 = arith.constant 0.000000e+00 : f32
      %19 = vector.broadcast %cst_12 : f32 to vector<32x128xf32>
      %c0_13 = arith.constant 0 : index
      %c0_14 = arith.constant 0 : index
      %20 = vector.load %arg4[%c0_13, %c0_14] : memref<32x128xf32, #tpu.memory_space<vmem>>, vector<32x128xf32>
      tpu.vector_store %arg4[%c0_13, %c0_14], %19 {strides = array<i32>} : memref<32x128xf32, #tpu.memory_space<vmem>>, vector<32x128xf32>,
      %cst_15 = arith.constant 0.000000e+00 : f32
      %c0_16 = arith.constant 0 : index
      %21 = memref.load %arg3[%c0_16] : memref<1xf32, #tpu.memory_space<smem>>
      memref.store %cst_15, %arg3[%c0_16] : memref<1xf32, #tpu.memory_space<smem>>
    } else {
    }
    %c0 = arith.constant 0 : index
    %c0_1 = arith.constant 0 : index
    %3 = vector.load %arg1[%c0, %c0_1] : memref<32x128xf32, #tpu.memory_space<vmem>>, vector<32x128xf32>
    %c0_2 = arith.constant 0 : index
    %c0_3 = arith.constant 0 : index
    %4 = vector.load %arg2[%c0_2, %c0_3] : memref<32x128xf32, #tpu.memory_space<vmem>>, vector<32x128xf32>
    %5 = arith.subf %3, %4 : vector<32x128xf32>
    %6 = arith.mulf %5, %5 : vector<32x128xf32>
    %c0_4 = arith.constant 0 : index
    %c0_5 = arith.constant 0 : index
    %7 = vector.load %arg4[%c0_4, %c0_5] : memref<32x128xf32, #tpu.memory_space<vmem>>, vector<32x128xf32>
    %cst = arith.constant 0.000000e+00 : f32
    %8 = vector.broadcast %cst : f32 to vector<32x128xf32>
    %9 = arith.cmpf oge, %4, %8 : vector<32x128xf32>
    %cst_6 = arith.constant 0.000000e+00 : f32
    %10 = vector.broadcast %cst_6 : f32 to vector<32x128xf32>
    %11 = arith.select %9, %6, %10 : vector<32x128xi1>, vector<32x128xf32>
    %12 = vector.shape_cast %11 : vector<32x128xf32> to vector<1x32x128xf32>
    %cst_7 = arith.constant dense<0.000000e+00> : vector<32x128xf32>
    %13 = vector.multi_reduction <add>, %12, %cst_7 [0] : vector<1x32x128xf32> to vector<32x128xf32>
    %14 = arith.addf %7, %13 : vector<32x128xf32>
    %c0_8 = arith.constant 0 : index
    %c0_9 = arith.constant 0 : index
    %15 = vector.load %arg4[%c0_8, %c0_9] : memref<32x128xf32, #tpu.memory_space<vmem>>, vector<32x128xf32>
    tpu.vector_store %arg4[%c0_8, %c0_9], %14 {strides = array<i32>} : memref<32x128xf32, #tpu.memory_space<vmem>>, vector<32x128xf32>,
    %c0_i32_10 = arith.constant 0 : i32
    %16 = arith.cmpi eq, %arg0, %c0_i32_10 : i32
    %17 = arith.extui %16 : i1 to i32
    %c0_i32_11 = arith.constant 0 : i32
    %18 = arith.cmpi ne, %17, %c0_i32_11 : i32
    scf.if %18 {
      %c0_12 = arith.constant 0 : index
      %c0_13 = arith.constant 0 : index
      %19 = vector.load %arg4[%c0_12, %c0_13] : memref<32x128xf32, #tpu.memory_space<vmem>>, vector<32x128xf32>
      %20 = vector.shape_cast %19 : vector<32x128xf32> to vector<1x32x128xf32>
      %cst_14 = arith.constant dense<0.000000e+00> : vector<1xf32>
      %21 = vector.multi_reduction <add>, %20, %cst_14 [1, 2] : vector<1x32x128xf32> to vector<1xf32>
      %22 = vector.shape_cast %21 : vector<1xf32> to vector<1x1x1xf32>
      %23 = vector.extract %22[0, 0, 0] : f32 from vector<1x1x1xf32>
      %cst_15 = arith.constant 4.8828125E-4 : f32
      %24 = arith.mulf %23, %cst_15 : f32
      %c0_16 = arith.constant 0 : index
      %25 = memref.load %arg3[%c0_16] : memref<1xf32, #tpu.memory_space<smem>>
      memref.store %24, %arg3[%c0_16] : memref<1xf32, #tpu.memory_space<smem>>
    } else {
    }
    return
  }
  func.func @transform_0(%arg0: i32) -> (i32, i32) {
    %c0_i32 = arith.constant 0 : i32
    %c0_i32_0 = arith.constant 0 : i32
    return %arg0, %c0_i32 : i32, i32
  }
  func.func @transform_1(%arg0: i32) -> (i32, i32) {
    %c0_i32 = arith.constant 0 : i32
    %c0_i32_0 = arith.constant 0 : i32
    return %arg0, %c0_i32 : i32, i32
  }
  func.func @transform_2(%arg0: i32) -> i32 {
    %c0_i32 = arith.constant 0 : i32
    %c0_i32_0 = arith.constant 0 : i32
    return %c0_i32 : i32
  }
}

</mosaic_0001>

<llo_original>
// kernel: custom_loss_unet.1
$region0: #{custom_loss_unet.1}
  #allocation0 [shape = 'u32[]', space=smem, size = 0x4, offset = 0x4, fixed_abs, tag = 'smem constant byte address 0x4 - core index']
  #allocation1 [shape = 'u32[72,128]{1,0:T(1,128)}', space=vmem, size = 0x9000, scoped, tag = 'internal scratch']
  #allocation2 [shape = 'f32[32,128]{1,0:T(8,128)}', space=vmem, size = 0x4000, scoped, tag = 'scratch operand']
  %s0 = inlined_call_operand.vmem [shape: f32[32,128], index: 0, kind: input, shape index: {}]
  %s1 = inlined_call_operand.vmem [shape: f32[32,128], index: 1, kind: input, shape index: {}]
  %s2 = inlined_call_operand.hbm [shape: f32[1], index: 2, kind: output, shape index: {}]
  %s3 = sld [smem:[#allocation0]]
  $region26: #{custom_loss_unet.1} parent=0
    _
  %s5 = ssub.s32 1, %s3
  %s6 = scalar_select 0, %s5, %s3
  $region1: #{custom_loss_unet.1} parent=0
    #allocation3 [shape = 'u8[512]{0}', space=smem, size = 0x200, scoped, tag = 'output window, operand 0, single buffered']
    #allocation4 [shape = 's32[1]{0}', space=sflag, size = 0x4, scoped, tag = 'scoped memory for custom_loss_unet.1']
    %7 = vsyncpa [#allocation4], 0
    // Predicated region
    $region2: #{custom_loss_unet.1} parent=1 // pred_check
      _
    $region3: #{custom_loss_unet.1} parent=1 // pred_check_branch
      %9 = sbr.rel (0) target = $region5
    $region4: #{custom_loss_unet.1} parent=1 // pred_region
      _
    $region5: #{custom_loss_unet.1} parent=1 // pred_fallthru
      _
    // Predicated region
    $region6: #{custom_loss_unet.1} parent=1 // pred_check
      _
    $region7: #{custom_loss_unet.1} parent=1 // pred_check_branch
      %11 = sbr.rel (0) target = $region9
    $region8: #{custom_loss_unet.1} parent=1 // pred_region
      _
    $region9: #{custom_loss_unet.1} parent=1 // pred_fallthru
      _
    %p12 = scmp.eq.s32.totalorder 0, 0
    // Predicated region
    $region10: #{custom_loss_unet.1} parent=1 // pred_check
      %p13 = pneg %p12
    $region11: #{custom_loss_unet.1} parent=1 // pred_check_branch
      %15 = sbr.rel (%p13) target = $region13
    $region12: #{custom_loss_unet.1} parent=1 // pred_region
      %16 = vst [vmem:[#allocation2] sm:$0xff] 0.0
      %17 = vst [vmem:[#allocation2 + $0x8] sm:$0xff] 0.0
      %18 = vst [vmem:[#allocation2 + $0x10] sm:$0xff] 0.0
      %19 = vst [vmem:[#allocation2 + $0x18] sm:$0xff] 0.0
      %s20 = scalar_lea.smem [#allocation3], 0
      %21 = sst [smem:[%s20]] 0.0
    $region13: #{custom_loss_unet.1} parent=1 // pred_fallthru
      _
    %v22 = vld [vmem:[%s0] sm:$0xff]
    %v23 = vld [vmem:[%s0 + $0x8] sm:$0xff]
    %v24 = vld [vmem:[%s0 + $0x10] sm:$0xff]
    %v25 = vld [vmem:[%s0 + $0x18] sm:$0xff]
    %v26 = vld [vmem:[%s1] sm:$0xff]
    %v27 = vld [vmem:[%s1 + $0x8] sm:$0xff]
    %v28 = vld [vmem:[%s1 + $0x10] sm:$0xff]
    %v29 = vld [vmem:[%s1 + $0x18] sm:$0xff]
    %v30 = vsub.f32 %v22, %v26
    %v31 = vsub.f32 %v23, %v27
    %v32 = vsub.f32 %v24, %v28
    %v33 = vsub.f32 %v25, %v29
    %v34 = vmul.f32 %v30, %v30
    %v35 = vmul.f32 %v31, %v31
    %v36 = vmul.f32 %v32, %v32
    %v37 = vmul.f32 %v33, %v33
    %v38 = vld [vmem:[#allocation2] sm:$0xff]
    %v39 = vld [vmem:[#allocation2 + $0x8] sm:$0xff]
    %v40 = vld [vmem:[#allocation2 + $0x10] sm:$0xff]
    %v41 = vld [vmem:[#allocation2 + $0x18] sm:$0xff]
    %vm42 = vcmp.ge.f32.partialorder %v26, 0.0
    %vm43 = vcmp.ge.f32.partialorder %v27, 0.0
    %vm44 = vcmp.ge.f32.partialorder %v28, 0.0
    %vm45 = vcmp.ge.f32.partialorder %v29, 0.0
    %v46 = vsel %vm42, %v34, 0.0
    %v47 = vsel %vm43, %v35, 0.0
    %v48 = vsel %vm44, %v36, 0.0
    %v49 = vsel %vm45, %v37, 0.0
    %v50 = vadd.f32 %v46, 0.0
    %v51 = vadd.f32 %v47, 0.0
    %v52 = vadd.f32 %v48, 0.0
    %v53 = vadd.f32 %v49, 0.0
    %v54 = vadd.f32 %v38, %v50
    %v55 = vadd.f32 %v39, %v51
    %v56 = vadd.f32 %v40, %v52
    %v57 = vadd.f32 %v41, %v53
    %58 = vst [vmem:[#allocation2] sm:$0xff] %v54
    %59 = vst [vmem:[#allocation2 + $0x8] sm:$0xff] %v55
    %60 = vst [vmem:[#allocation2 + $0x10] sm:$0xff] %v56
    %61 = vst [vmem:[#allocation2 + $0x18] sm:$0xff] %v57
    // Predicated region
    $region14: #{custom_loss_unet.1} parent=1 // pred_check
      %p62 = pneg %p12
    $region15: #{custom_loss_unet.1} parent=1 // pred_check_branch
      %64 = sbr.rel (%p62) target = $region17
    $region16: #{custom_loss_unet.1} parent=1 // pred_region
      %v65 = vld [vmem:[#allocation2] sm:$0xff]
      %v66 = vld [vmem:[#allocation2 + $0x8] sm:$0xff]
      %v67 = vld [vmem:[#allocation2 + $0x10] sm:$0xff]
      %v68 = vld [vmem:[#allocation2 + $0x18] sm:$0xff]
      %v69 = vadd.f32 %v65, %v66
      %v70 = vadd.f32 %v69, %v67
      %v71 = vadd.f32 %v70, %v68
      %72 = vadd.xlane.f32.xlu0 %v71
      %v73 = vpop.xlane.xlu0 %72
      %v74 = vrot.slane %v73, 4
      %v75 = vadd.f32 %v73, %v74
      %v76 = vrot.slane %v75, 2
      %v77 = vadd.f32 %v75, %v76
      %v78 = vrot.slane %v77, 1
      %v79 = vadd.f32 %v77, %v78
      %s80 = vtos %v79
      %s81 = smul.f32 %s80, 0.00048828125
      %s82 = scalar_lea.smem [#allocation3], 0
      %83 = sst [smem:[%s82]] %s81
    $region17: #{custom_loss_unet.1} parent=1 // pred_fallthru
      _
    // Predicated region
    $region18: #{custom_loss_unet.1} parent=1 // pred_check
      _
    $region19: #{custom_loss_unet.1} parent=1 // pred_check_branch
      %85 = sbr.rel (0) target = $region21
    $region20: #{custom_loss_unet.1} parent=1 // pred_region
      %87 = vsyncadd [#allocation4], 0
      %s89 = sshll.u32 %s2, 4
      %s90 = int_to_ptr.hbm [resolvable:$true] %s89
      %92 = dma.smem_to_hbm [#allocation3], 16, %s90, [#allocation4]
    $region21: #{custom_loss_unet.1} parent=1 // pred_fallthru
      _
    // Predicated region
    $region22: #{custom_loss_unet.1} parent=1 // pred_check
      _
    $region23: #{custom_loss_unet.1} parent=1 // pred_check_branch
      %94 = sbr.rel (0) target = $region25
    $region24: #{custom_loss_unet.1} parent=1 // pred_region
      %96 = dma.done [#allocation4], 16
    $region25: #{custom_loss_unet.1} parent=1 // pred_fallthru
      _
    %97 = sfence
    %98 = vsyncpa [#allocation4], 1

</llo_original>
